<compile_context>
chip_gen: v7x
topology: tpu7x:2x2x1
jax: 0.10.0
libtpu: 0.0.40
codegen_flags: <defaults>
</compile_context>

<pallas_src>
import functools

import jax
import jax.numpy as jnp
from jax import lax
from jax.experimental import pallas as pl
from jax.experimental.pallas import tpu as pltpu


def _cdiv(a, b):
    return (a + b - 1) // b


def _round_up(x, m):
    return _cdiv(x, m) * m


def _sigmoid(x):
    # 1 EUP op (tanh) + 2 VPU ops instead of exp + reciprocal/divide.
    # Mathematically identical to sigmoid; accurate to f32 rounding.
    return 0.5 * jnp.tanh(0.5 * x) + 0.5


def _dice_loss_kernel(x_ref, t_ref, loss_ref, inter_acc, union_acc, *,
                      smooth, n_cols):
    """One (row_tile, col_tile) grid step.

    x_ref, t_ref : VMEM tiles (tr, tc) of logits / binary targets.
    loss_ref     : VMEM tile (tr, 1) per-row (1 - dice), written on last col step.
    inter_acc, union_acc : f32 VMEM scratch, persistent across column steps.
       shape (tr, 128) -> lane-dense partial sums (chunked, pure-VPU accumulation)
       shape (tr, 1)   -> fallback: per-row cross-lane reduce every step.
    """
    c = pl.program_id(1)
    tr, tc = x_ref.shape
    acc_w = inter_acc.shape[-1]

    num_col_tiles = _cdiv(n_cols, tc)                   # static
    rem_in_last = n_cols - (num_col_tiles - 1) * tc     # static, in (0, tc]
    needs_mask = rem_in_last < tc                       # static

    @pl.when(c == 0)
    def _():
        inter_acc[...] = jnp.zeros_like(inter_acc)
        union_acc[...] = jnp.zeros_like(union_acc)

    if acc_w == 128:
        # Lane-dense accumulation: walk the tile in aligned 128-lane chunks.
        # All adds are VPU; no per-step XLU reduce, no 1-lane-wide RMW.
        if needs_mask:
            lane = lax.broadcasted_iota(jnp.int32, (tr, 128), 1)
            col_base = c * tc
        for i in range(tc // 128):
            off = i * 128
            xs = x_ref[:, pl.ds(off, 128)].astype(jnp.float32)
            ts = t_ref[:, pl.ds(off, 128)].astype(jnp.float32)
            ps = _sigmoid(xs)
            # Chunks fully in-bounds for *every* column tile skip the mask
            # statically.  Ragged chunks select (never multiply-by-mask:
            # boundary-block reads may hold NaN/Inf garbage).
            if needs_mask and (off + 128 > rem_in_last):
                valid = (col_base + off + lane) < n_cols
                ps = jnp.where(valid, ps, 0.0)
                ts = jnp.where(valid, ts, 0.0)
            inter_acc[...] += ps * ts
            union_acc[...] += ps + ts
    else:
        # Whole-tile fallback (tc not a multiple of 128, or very many chunks).
        xs = x_ref[...].astype(jnp.float32)
        ts = t_ref[...].astype(jnp.float32)
        ps = _sigmoid(xs)
        if needs_mask:
            lane = lax.broadcasted_iota(jnp.int32, (tr, tc), 1)
            valid = (c * tc + lane) < n_cols
            ps = jnp.where(valid, ps, 0.0)
            ts = jnp.where(valid, ts, 0.0)
        inter_acc[...] += jnp.sum(ps * ts, axis=1, keepdims=True)
        union_acc[...] += jnp.sum(ps + ts, axis=1, keepdims=True)

    @pl.when(c == num_col_tiles - 1)
    def _():
        inter = inter_acc[...]
        union = union_acc[...]
        if acc_w != 1:
            inter = jnp.sum(inter, axis=1, keepdims=True)   # single XLU reduce
            union = jnp.sum(union, axis=1, keepdims=True)
        dice = (2.0 * inter + smooth) / (union + smooth)
        loss_ref[...] = 1.0 - dice


def dice_loss(inputs, targets, smooth=1e-6, block_cols=None):
    """inputs, targets: [B, C, H, W] (NCHW, matching the PyTorch module).

    Any float dtype is accepted; ship bf16 logits/targets to halve HBM traffic
    (the kernel upcasts each tile to f32 before the math, so accuracy is kept).
    `block_cols` is a test/tuning override for the column-tile width.
    """
    assert inputs.shape == targets.shape
    B, C, H, W = inputs.shape
    R, N = B * C, H * W

    x2d = inputs.reshape(R, N)
    t2d = targets.reshape(R, N)

    # ---- per-generation tile budget ---------------------------------------
    try:
        kind = jax.devices()[0].device_kind.lower()
    except Exception:
        kind = ""
    is_v5 = "v5" in kind
    # ~2 MiB/input tile on v5e (16 MiB scoped-VMEM default), ~4 MiB on v6e/v7x
    # (32 MiB default): 2 inputs x 2 pipeline buffers stay well inside scoped
    # VMEM while amortizing the ~0.35 us per-grid-step overhead.
    per_input_budget = (2 if is_v5 else 4) * 1024 * 1024

    # ---- rows per tile ------------------------------------------------------
    if R < 8:
        tr = R                                   # exact-height block is legal
    else:
        tr = min(_round_up(R, 8), 128)
        # v7x shards the "parallel" row axis across its 2 TensorCores: make
        # sure there are at least two row tiles whenever R allows it.
        if _cdiv(R, tr) < 2 and R > 8:
            tr = min(_round_up(_cdiv(R, 2), 8), 128)
        # Even out row-tile sizes (same tile count) to cut garbage-row compute
        # in the partial last row tile (e.g. R=130: 128+2 -> 72+58).
        n_row_tiles = _cdiv(R, tr)
        tr = min(tr, _round_up(_cdiv(R, n_row_tiles), 8))

    # ---- cols per tile ------------------------------------------------------
    bytes_per_col = x2d.dtype.itemsize + t2d.dtype.itemsize
    tc = (2 * per_input_budget) // (tr * bytes_per_col)
    tc = max((tc // 128) * 128, 128)
    if block_cols is not None:
        tc = max((min(tc, block_cols) // 128) * 128, 128)
    if N <= tc:
        # Single column tile: an exact-width block is always a legal block dim
        # and removes all column masking / boundary garbage.
        tc = N

    grid = (_cdiv(R, tr), _cdiv(N, tc))

    # Lane-dense accumulators when the tile splits into <=128 aligned chunks.
    chunked = (tc % 128 == 0) and (tc // 128) <= 128
    acc_w = 128 if chunked else 1

    # ---- VMEM budget / cost hint -------------------------------------------
    vmem_need = (2 * tr * tc * bytes_per_col       # 2 inputs, double-buffered
                 + 2 * tr * acc_w * 4              # accumulators
                 + 4 * tr * 4)                     # output (double-buffered)
    vmem_limit = int(min(max(vmem_need + (2 << 20), 16 << 20), 48 << 20))

    cost = pl.CostEstimate(
        flops=int(6 * R * N),
        transcendentals=int(R * N),
        bytes_accessed=int(R * N * bytes_per_col + R * 4),
    )

    per_row = pl.pallas_call(
        functools.partial(_dice_loss_kernel, smooth=float(smooth), n_cols=N),
        out_shape=jax.ShapeDtypeStruct((R, 1), jnp.float32),
        grid_spec=pltpu.PrefetchScalarGridSpec(
            num_scalar_prefetch=0,
            grid=grid,
            in_specs=[
                pl.BlockSpec((tr, tc), lambda r, c: (r, c)),
                pl.BlockSpec((tr, tc), lambda r, c: (r, c)),
            ],
            out_specs=pl.BlockSpec((tr, 1), lambda r, c: (r, 0)),
            scratch_shapes=[
                pltpu.VMEM((tr, acc_w), jnp.float32),   # intersection partials
                pltpu.VMEM((tr, acc_w), jnp.float32),   # union partials
            ],
        ),
        compiler_params=pltpu.CompilerParams(
            dimension_semantics=("parallel", "arbitrary"),
            vmem_limit_bytes=vmem_limit,
        ),
        cost_estimate=cost,
    )(x2d, t2d)

    # Mean over the TRUE B*C rows (out_shape is exactly (R, 1); partial
    # row-tile writes past R are masked by Pallas, so nothing to slice off).
    return jnp.mean(per_row)


def dice_loss_ref(inputs, targets, smooth=1e-6):
    p = jax.nn.sigmoid(inputs.astype(jnp.float32))
    t = targets.astype(jnp.float32)
    inter = jnp.sum(p * t, axis=(2, 3))
    union = jnp.sum(p, axis=(2, 3)) + jnp.sum(t, axis=(2, 3))
    dice = (2.0 * inter + smooth) / (union + smooth)
    return jnp.mean(1.0 - dice)


if __name__ == "__main__":
    key = jax.random.PRNGKey(0)

    # 1) Shape matching the module's intended use (small, f32 logits).
    k1, k2 = jax.random.split(key)
    B, C, H, W = 2, 4, 16, 16
    x1 = jax.random.normal(k1, (B, C, H, W), dtype=jnp.float32)
    t1 = (jax.random.uniform(k2, (B, C, H, W)) > 0.5).astype(jnp.float32)
    loss1 = jax.block_until_ready(dice_loss(x1, t1))
    ref1 = jax.block_until_ready(dice_loss_ref(x1, t1))
    assert jnp.allclose(loss1, ref1, atol=1e-5, rtol=1e-5), (loss1, ref1)

    # 2) Ragged rows/cols (R=6, N=1040): single exact-width column tile
    #    (no padding, no masking) + partial row tile masked on write.
    k3, k4 = jax.random.split(k1)
    x2 = jax.random.normal(k3, (2, 3, 16, 65), dtype=jnp.float32)
    t2 = (jax.random.uniform(k4, (2, 3, 16, 65)) > 0.5).astype(jnp.float32)
    loss2 = jax.block_until_ready(dice_loss(x2, t2))
    ref2 = jax.block_until_ready(dice_loss_ref(x2, t2))
    assert jnp.allclose(loss2, ref2, atol=1e-5, rtol=1e-5), (loss2, ref2)

    # 3) Multi-column-tile path: exercises the lane-dense accumulators, the
    #    ragged last-column-tile mask, and two "parallel" row tiles.
    k5, k6 = jax.random.split(k3)
    x3 = jax.random.normal(k5, (3, 4, 16, 65), dtype=jnp.float32)
    t3 = (jax.random.uniform(k6, (3, 4, 16, 65)) > 0.5).astype(jnp.float32)
    loss3 = jax.block_until_ready(dice_loss(x3, t3, block_cols=256))
    ref3 = jax.block_until_ready(dice_loss_ref(x3, t3))
    assert jnp.allclose(loss3, ref3, atol=1e-5, rtol=1e-5), (loss3, ref3)

    print("KERNEL_OK")
</pallas_src>

<mosaic_0001>
module attributes {stable_mosaic.version = 11 : i64} {
  func.func @_dice_loss_kernel(%arg0: i32, %arg1: i32, %arg2: memref<8x256xf32, #tpu.memory_space<vmem>>, %arg3: memref<8x256xf32, #tpu.memory_space<vmem>>, %arg4: memref<8x1xf32, #tpu.memory_space<vmem>>, %arg5: memref<8x128xf32, #tpu.memory_space<vmem>>, %arg6: memref<8x128xf32, #tpu.memory_space<vmem>>) attributes {dimension_semantics = [#tpu.dimension_semantics<parallel>, #tpu.dimension_semantics<arbitrary>], iteration_bounds = array<i64: 1, 1>, scalar_prefetch = 0 : i64, scratch_operands = 2 : i64, tpu.core_type = #tpu.core_type<tc>, window_params = [{transform_indices = @transform_0, window_bounds = array<i64: 8, 256>}, {transform_indices = @transform_1, window_bounds = array<i64: 8, 256>}, {transform_indices = @transform_2, window_bounds = array<i64: 8, 1>}]} {
    %c0_i32 = arith.constant 0 : i32
    %0 = arith.cmpi eq, %arg1, %c0_i32 : i32
    %1 = arith.extui %0 : i1 to i32
    %c0_i32_0 = arith.constant 0 : i32
    %2 = arith.cmpi ne, %1, %c0_i32_0 : i32
    scf.if %2 {
      %cst_30 = arith.constant 0.000000e+00 : f32
      %40 = vector.broadcast %cst_30 : f32 to vector<8x128xf32>
      %c0_31 = arith.constant 0 : index
      %c0_32 = arith.constant 0 : index
      %41 = vector.load %arg5[%c0_31, %c0_32] : memref<8x128xf32, #tpu.memory_space<vmem>>, vector<8x128xf32>
      tpu.vector_store %arg5[%c0_31, %c0_32], %40 {strides = array<i32>} : memref<8x128xf32, #tpu.memory_space<vmem>>, vector<8x128xf32>,
      %cst_33 = arith.constant 0.000000e+00 : f32
      %42 = vector.broadcast %cst_33 : f32 to vector<8x128xf32>
      %c0_34 = arith.constant 0 : index
      %c0_35 = arith.constant 0 : index
      %43 = vector.load %arg6[%c0_34, %c0_35] : memref<8x128xf32, #tpu.memory_space<vmem>>, vector<8x128xf32>
      tpu.vector_store %arg6[%c0_34, %c0_35], %42 {strides = array<i32>} : memref<8x128xf32, #tpu.memory_space<vmem>>, vector<8x128xf32>,
    } else {
    }
    %c0 = arith.constant 0 : index
    %c0_1 = arith.constant 0 : index
    %3 = vector.load %arg2[%c0, %c0_1] : memref<8x256xf32, #tpu.memory_space<vmem>>, vector<8x128xf32>
    %c0_2 = arith.constant 0 : index
    %c0_3 = arith.constant 0 : index
    %4 = vector.load %arg3[%c0_2, %c0_3] : memref<8x256xf32, #tpu.memory_space<vmem>>, vector<8x128xf32>
    %cst = arith.constant 5.000000e-01 : f32
    %5 = vector.broadcast %cst : f32 to vector<8x128xf32>
    %6 = arith.mulf %5, %3 : vector<8x128xf32>
    %7 = math.tanh %6 : vector<8x128xf32>
    %cst_4 = arith.constant 5.000000e-01 : f32
    %8 = vector.broadcast %cst_4 : f32 to vector<8x128xf32>
    %9 = arith.mulf %8, %7 : vector<8x128xf32>
    %cst_5 = arith.constant 5.000000e-01 : f32
    %10 = vector.broadcast %cst_5 : f32 to vector<8x128xf32>
    %11 = arith.addf %9, %10 : vector<8x128xf32>
    %c0_6 = arith.constant 0 : index
    %c0_7 = arith.constant 0 : index
    %12 = vector.load %arg5[%c0_6, %c0_7] : memref<8x128xf32, #tpu.memory_space<vmem>>, vector<8x128xf32>
    %13 = arith.mulf %11, %4 : vector<8x128xf32>
    %14 = arith.addf %12, %13 : vector<8x128xf32>
    %c0_8 = arith.constant 0 : index
    %c0_9 = arith.constant 0 : index
    %15 = vector.load %arg5[%c0_8, %c0_9] : memref<8x128xf32, #tpu.memory_space<vmem>>, vector<8x128xf32>
    tpu.vector_store %arg5[%c0_8, %c0_9], %14 {strides = array<i32>} : memref<8x128xf32, #tpu.memory_space<vmem>>, vector<8x128xf32>,
    %c0_10 = arith.constant 0 : index
    %c0_11 = arith.constant 0 : index
    %16 = vector.load %arg6[%c0_10, %c0_11] : memref<8x128xf32, #tpu.memory_space<vmem>>, vector<8x128xf32>
    %17 = arith.addf %11, %4 : vector<8x128xf32>
    %18 = arith.addf %16, %17 : vector<8x128xf32>
    %c0_12 = arith.constant 0 : index
    %c0_13 = arith.constant 0 : index
    %19 = vector.load %arg6[%c0_12, %c0_13] : memref<8x128xf32, #tpu.memory_space<vmem>>, vector<8x128xf32>
    tpu.vector_store %arg6[%c0_12, %c0_13], %18 {strides = array<i32>} : memref<8x128xf32, #tpu.memory_space<vmem>>, vector<8x128xf32>,
    %c0_14 = arith.constant 0 : index
    %c128 = arith.constant 128 : index
    %20 = vector.load %arg2[%c0_14, %c128] : memref<8x256xf32, #tpu.memory_space<vmem>>, vector<8x128xf32>
    %c0_15 = arith.constant 0 : index
    %c128_16 = arith.constant 128 : index
    %21 = vector.load %arg3[%c0_15, %c128_16] : memref<8x256xf32, #tpu.memory_space<vmem>>, vector<8x128xf32>
    %cst_17 = arith.constant 5.000000e-01 : f32
    %22 = vector.broadcast %cst_17 : f32 to vector<8x128xf32>
    %23 = arith.mulf %22, %20 : vector<8x128xf32>
    %24 = math.tanh %23 : vector<8x128xf32>
    %cst_18 = arith.constant 5.000000e-01 : f32
    %25 = vector.broadcast %cst_18 : f32 to vector<8x128xf32>
    %26 = arith.mulf %25, %24 : vector<8x128xf32>
    %cst_19 = arith.constant 5.000000e-01 : f32
    %27 = vector.broadcast %cst_19 : f32 to vector<8x128xf32>
    %28 = arith.addf %26, %27 : vector<8x128xf32>
    %c0_20 = arith.constant 0 : index
    %c0_21 = arith.constant 0 : index
    %29 = vector.load %arg5[%c0_20, %c0_21] : memref<8x128xf32, #tpu.memory_space<vmem>>, vector<8x128xf32>
    %30 = arith.mulf %28, %21 : vector<8x128xf32>
    %31 = arith.addf %29, %30 : vector<8x128xf32>
    %c0_22 = arith.constant 0 : index
    %c0_23 = arith.constant 0 : index
    %32 = vector.load %arg5[%c0_22, %c0_23] : memref<8x128xf32, #tpu.memory_space<vmem>>, vector<8x128xf32>
    tpu.vector_store %arg5[%c0_22, %c0_23], %31 {strides = array<i32>} : memref<8x128xf32, #tpu.memory_space<vmem>>, vector<8x128xf32>,
    %c0_24 = arith.constant 0 : index
    %c0_25 = arith.constant 0 : index
    %33 = vector.load %arg6[%c0_24, %c0_25] : memref<8x128xf32, #tpu.memory_space<vmem>>, vector<8x128xf32>
    %34 = arith.addf %28, %21 : vector<8x128xf32>
    %35 = arith.addf %33, %34 : vector<8x128xf32>
    %c0_26 = arith.constant 0 : index
    %c0_27 = arith.constant 0 : index
    %36 = vector.load %arg6[%c0_26, %c0_27] : memref<8x128xf32, #tpu.memory_space<vmem>>, vector<8x128xf32>
    tpu.vector_store %arg6[%c0_26, %c0_27], %35 {strides = array<i32>} : memref<8x128xf32, #tpu.memory_space<vmem>>, vector<8x128xf32>,
    %c0_i32_28 = arith.constant 0 : i32
    %37 = arith.cmpi eq, %arg1, %c0_i32_28 : i32
    %38 = arith.extui %37 : i1 to i32
    %c0_i32_29 = arith.constant 0 : i32
    %39 = arith.cmpi ne, %38, %c0_i32_29 : i32
    scf.if %39 {
      %c0_30 = arith.constant 0 : index
      %c0_31 = arith.constant 0 : index
      %40 = vector.load %arg5[%c0_30, %c0_31] : memref<8x128xf32, #tpu.memory_space<vmem>>, vector<8x128xf32>
      %c0_32 = arith.constant 0 : index
      %c0_33 = arith.constant 0 : index
      %41 = vector.load %arg6[%c0_32, %c0_33] : memref<8x128xf32, #tpu.memory_space<vmem>>, vector<8x128xf32>
      %cst_34 = arith.constant dense<0.000000e+00> : vector<8xf32>
      %42 = vector.multi_reduction <add>, %40, %cst_34 [1] : vector<8x128xf32> to vector<8xf32>
      %43 = vector.shape_cast %42 : vector<8xf32> to vector<8x1xf32>
      %cst_35 = arith.constant dense<0.000000e+00> : vector<8xf32>
      %44 = vector.multi_reduction <add>, %41, %cst_35 [1] : vector<8x128xf32> to vector<8xf32>
      %45 = vector.shape_cast %44 : vector<8xf32> to vector<8x1xf32>
      %cst_36 = arith.constant 2.000000e+00 : f32
      %46 = vector.broadcast %cst_36 : f32 to vector<8x1xf32>
      %47 = arith.mulf %46, %43 : vector<8x1xf32>
      %cst_37 = arith.constant 9.99999997E-7 : f32
      %48 = vector.broadcast %cst_37 : f32 to vector<8x1xf32>
      %49 = arith.addf %47, %48 : vector<8x1xf32>
      %cst_38 = arith.constant 9.99999997E-7 : f32
      %50 = vector.broadcast %cst_38 : f32 to vector<8x1xf32>
      %51 = arith.addf %45, %50 : vector<8x1xf32>
      %52 = arith.divf %49, %51 : vector<8x1xf32>
      %cst_39 = arith.constant 1.000000e+00 : f32
      %53 = vector.broadcast %cst_39 : f32 to vector<8x1xf32>
      %54 = arith.subf %53, %52 : vector<8x1xf32>
      %c0_40 = arith.constant 0 : index
      %c0_41 = arith.constant 0 : index
      %55 = vector.load %arg4[%c0_40, %c0_41] : memref<8x1xf32, #tpu.memory_space<vmem>>, vector<8x1xf32>
      tpu.vector_store %arg4[%c0_40, %c0_41], %54 {strides = array<i32>} : memref<8x1xf32, #tpu.memory_space<vmem>>, vector<8x1xf32>,
    } else {
    }
    return
  }
  func.func @transform_0(%arg0: i32, %arg1: i32) -> (i32, i32) {
    %c0_i32 = arith.constant 0 : i32
    return %arg0, %arg1 : i32, i32
  }
  func.func @transform_1(%arg0: i32, %arg1: i32) -> (i32, i32) {
    %c0_i32 = arith.constant 0 : i32
    return %arg0, %arg1 : i32, i32
  }
  func.func @transform_2(%arg0: i32, %arg1: i32) -> (i32, i32) {
    %c0_i32 = arith.constant 0 : i32
    %c0_i32_0 = arith.constant 0 : i32
    return %arg0, %c0_i32 : i32, i32
  }
}

</mosaic_0001>

<llo_original>
// kernel: tpu_custom_call.1
$region0: #{tpu_custom_call.1}
  #allocation0 [shape = 'u32[]', space=smem, size = 0x4, offset = 0x4, fixed_abs, tag = 'smem constant byte address 0x4 - core index']
  #allocation1 [shape = 'u32[144,128]{1,0:T(1,128)}', space=vmem, size = 0x12000, scoped, tag = 'internal scratch']
  #allocation2 [shape = 'f32[8,128]{1,0:T(8,128)}', space=vmem, size = 0x1000, scoped, tag = 'scratch operand']
  #allocation3 [shape = 'f32[8,128]{1,0:T(8,128)}', space=vmem, size = 0x1000, scoped, tag = 'scratch operand']
  %s0 = inlined_call_operand.hbm [shape: f32[8,256], index: 0, kind: input, shape index: {}]
  %s1 = inlined_call_operand.hbm [shape: f32[8,256], index: 1, kind: input, shape index: {}]
  %s2 = inlined_call_operand.vmem [shape: f32[8,1], index: 2, kind: output, shape index: {}]
  %s3 = sld [smem:[#allocation0]]
  $region34: #{tpu_custom_call.1} parent=0
    _
  %s5 = ssub.s32 1, %s3
  %s6 = scalar_select 0, %s5, %s3
  $region1: #{tpu_custom_call.1} parent=0
    #allocation4 [shape = 'u8[8192]{0}', space=vmem, size = 0x2000, scoped, tag = 'input window, operand 0, single buffered']
    #allocation5 [shape = 's32[1]{0}', space=sflag, size = 0x4, scoped, tag = 'scoped memory for tpu_custom_call.1']
    #allocation6 [shape = 'u8[8192]{0}', space=vmem, size = 0x2000, scoped, tag = 'input window, operand 1, single buffered']
    #allocation7 [shape = 's32[1]{0}', space=sflag, size = 0x4, scoped, tag = 'scoped memory for tpu_custom_call.1']
    %7 = vsyncpa [#allocation5], 0
    %8 = vsyncpa [#allocation7], 0
    // Predicated region
    $region2: #{tpu_custom_call.1} parent=1 // pred_check
      _
    $region3: #{tpu_custom_call.1} parent=1 // pred_check_branch
      %10 = sbr.rel (0) target = $region5
    $region4: #{tpu_custom_call.1} parent=1 // pred_region
      %s12 = ssub.s32 256, 256
      %13 = vsyncadd [#allocation5], %s12
      %s15 = sshll.u32 [#allocation4], 4
      %s16 = int_to_ptr.vmem [resolvable:$true] %s15
      %18 = dma.hbm_to_vmem [thread:$0]  %s0, 256, %s16, [#allocation5]
    $region5: #{tpu_custom_call.1} parent=1 // pred_fallthru
      _
    // Predicated region
    $region6: #{tpu_custom_call.1} parent=1 // pred_check
      _
    $region7: #{tpu_custom_call.1} parent=1 // pred_check_branch
      %20 = sbr.rel (0) target = $region9
    $region8: #{tpu_custom_call.1} parent=1 // pred_region
      %s22 = ssub.s32 256, 256
      %23 = vsyncadd [#allocation7], %s22
      %s25 = sshll.u32 [#allocation6], 4
      %s26 = int_to_ptr.vmem [resolvable:$true] %s25
      %28 = dma.hbm_to_vmem [thread:$0]  %s1, 256, %s26, [#allocation7]
    $region9: #{tpu_custom_call.1} parent=1 // pred_fallthru
      _
    // Predicated region
    $region10: #{tpu_custom_call.1} parent=1 // pred_check
      _
    $region11: #{tpu_custom_call.1} parent=1 // pred_check_branch
      %30 = sbr.rel (0) target = $region13
    $region12: #{tpu_custom_call.1} parent=1 // pred_region
      %31 = dma.done [#allocation5], 256
    $region13: #{tpu_custom_call.1} parent=1 // pred_fallthru
      _
    // Predicated region
    $region14: #{tpu_custom_call.1} parent=1 // pred_check
      _
    $region15: #{tpu_custom_call.1} parent=1 // pred_check_branch
      %33 = sbr.rel (0) target = $region17
    $region16: #{tpu_custom_call.1} parent=1 // pred_region
      %34 = dma.done [#allocation7], 256
    $region17: #{tpu_custom_call.1} parent=1 // pred_fallthru
      _
    %p35 = scmp.eq.s32.totalorder 0, 0
    // Predicated region
    $region18: #{tpu_custom_call.1} parent=1 // pred_check
      %p36 = pneg %p35
    $region19: #{tpu_custom_call.1} parent=1 // pred_check_branch
      %38 = sbr.rel (%p36) target = $region21
    $region20: #{tpu_custom_call.1} parent=1 // pred_region
      %39 = vst [vmem:[#allocation2] sm:$0xff] 0.0
      %40 = vst [vmem:[#allocation3] sm:$0xff] 0.0
    $region21: #{tpu_custom_call.1} parent=1 // pred_fallthru
      _
    %v41 = vld [vmem:[#allocation4] sm:$0xff]
    %v42 = vld [vmem:[#allocation6] sm:$0xff]
    %v43 = vmul.f32 %v41, 0.5
    %v44 = vtanh.pop %v43
    %v45 = vmul.f32 %v44, 0.5
    %v46 = vadd.f32 %v45, 0.5
    %v47 = vld [vmem:[#allocation2] sm:$0xff]
    %v48 = vmul.f32 %v46, %v42
    %v49 = vadd.f32 %v47, %v48
    %50 = vst [vmem:[#allocation2] sm:$0xff] %v49
    %v51 = vld [vmem:[#allocation3] sm:$0xff]
    %v52 = vadd.f32 %v46, %v42
    %v53 = vadd.f32 %v51, %v52
    %54 = vst [vmem:[#allocation3] sm:$0xff] %v53
    %v55 = vld [vmem:[#allocation4 + $0x8] sm:$0xff]
    %v56 = vld [vmem:[#allocation6 + $0x8] sm:$0xff]
    %v57 = vmul.f32 %v55, 0.5
    %v58 = vtanh.pop %v57
    %v59 = vmul.f32 %v58, 0.5
    %v60 = vadd.f32 %v59, 0.5
    %v61 = vld [vmem:[#allocation2] sm:$0xff]
    %v62 = vmul.f32 %v60, %v56
    %v63 = vadd.f32 %v61, %v62
    %64 = vst [vmem:[#allocation2] sm:$0xff] %v63
    %v65 = vld [vmem:[#allocation3] sm:$0xff]
    %v66 = vadd.f32 %v60, %v56
    %v67 = vadd.f32 %v65, %v66
    %68 = vst [vmem:[#allocation3] sm:$0xff] %v67
    // Predicated region
    $region22: #{tpu_custom_call.1} parent=1 // pred_check
      %p69 = pneg %p35
    $region23: #{tpu_custom_call.1} parent=1 // pred_check_branch
      %71 = sbr.rel (%p69) target = $region25
    $region24: #{tpu_custom_call.1} parent=1 // pred_region
      %v72 = vld [vmem:[#allocation2] sm:$0xff]
      %v73 = vld [vmem:[#allocation3] sm:$0xff]
      %74 = vadd.xlane.f32.xlu0 %v72
      %v75 = vpop.xlane.xlu0 %74
      %76 = vadd.xlane.f32.xlu0 %v73
      %v77 = vpop.xlane.xlu0 %76
      %v78 = vmul.f32 %v75, 2.0
      %v79 = vadd.f32 %v78, 1e-06
      %v80 = vadd.f32 %v77, 1e-06
      %v81 = vrcp.pop %v80
      %v82 = vmul.f32 %v79, %v81
      %v83 = vsub.f32 1.0, %v82
      %vm84 = vcmask 7168
      %85 = vst.msk [vmem:[%s2] sm:$0xff] %vm84, %v83
    $region25: #{tpu_custom_call.1} parent=1 // pred_fallthru
      _
    // Predicated region
    $region26: #{tpu_custom_call.1} parent=1 // pred_check
      _
    $region27: #{tpu_custom_call.1} parent=1 // pred_check_branch
      %87 = sbr.rel (0) target = $region29
    $region28: #{tpu_custom_call.1} parent=1 // pred_region
      _
    $region29: #{tpu_custom_call.1} parent=1 // pred_fallthru
      _
    // Predicated region
    $region30: #{tpu_custom_call.1} parent=1 // pred_check
      _
    $region31: #{tpu_custom_call.1} parent=1 // pred_check_branch
      %89 = sbr.rel (0) target = $region33
    $region32: #{tpu_custom_call.1} parent=1 // pred_region
      _
    $region33: #{tpu_custom_call.1} parent=1 // pred_fallthru
      _
    %90 = vsyncpa [#allocation5], 1
    %91 = vsyncpa [#allocation7], 1

</llo_original>
